<compile_context>
chip_gen: v5e
topology: v5e:2x2
jax: 0.10.0
libtpu: 0.0.40
codegen_flags: <defaults>
</compile_context>

<pallas_src>
import jax
import jax.numpy as jnp
from jax.experimental import pallas as pl
from jax.experimental.pallas import tpu as pltpu


def chacnn_kernel(w1_ref, b1_ref, w2_ref, b2_ref, x_ref, o_ref):
    # x_ref / o_ref: (C, TS, L)  -- per-channel dense 2D slabs.
    # w1_ref (C, MID), b1_ref (MID,), w2_ref (MID, C), b2_ref (C,) in SMEM.
    c_dim = x_ref.shape[0]
    mid = b1_ref.shape[0]

    # Load each channel's slab once (f32 compute regardless of HBM dtype).
    xs = [x_ref[cc].astype(jnp.float32) for cc in range(c_dim)]      # (TS, L)

    # Hidden layer: h[k] = relu(sum_c w1[c,k] * x[c] + b1[k])
    hs = []
    for k in range(mid):
        acc = xs[0] * w1_ref[0, k]
        for cc in range(1, c_dim):
            acc = acc + xs[cc] * w1_ref[cc, k]
        hs.append(jnp.maximum(acc + b1_ref[k], 0.0))

    # Output layer + channel gating: out[c] = x[c] * (sum_k w2[k,c] * h[k] + b2[c])
    for cc in range(c_dim):
        att = hs[0] * w2_ref[0, cc]
        for k in range(1, mid):
            att = att + hs[k] * w2_ref[k, cc]
        o_ref[cc] = (xs[cc] * (att + b2_ref[cc])).astype(o_ref.dtype)


def _round_up(n, m):
    return ((n + m - 1) // m) * m


def chacnn_forward(x, w1, b1, w2, b2, *, target_block_elems=128 * 1024):
    """x: (b, c, h, w).  w1: (c, mid), b1: (mid,), w2: (mid, c), b2: (c,)."""
    b, c, h, w = x.shape
    S = h * w

    # NCHW is already channels-major: (b, c, h*w) is a free reshape.
    x3 = x.reshape(b, c, S)

    # Lane width L: multiple of 128 that divides S; prefer one that keeps the
    # sublane extent R = S // L >= 8 so per-channel slabs fill whole vregs.
    L = 0
    for cand in (512, 256, 128):
        if S % cand == 0 and (S // cand) >= 8:
            L = cand
            break
    if L == 0:
        for cand in (512, 256, 128):
            if S % cand == 0:
                L = cand
                break

    pad = 0
    if L == 0:
        # Ragged spatial size: rare fallback that pays one pad/slice copy.
        # TODO(synk): mask the tail in-kernel to avoid this extra HBM traffic.
        L = 128
        Sp = _round_up(S, L)
        pad = Sp - S
        x3 = jnp.pad(x3, ((0, 0), (0, 0), (0, pad)))
    else:
        Sp = S

    R = Sp // L
    x4 = x3.reshape(b, c, R, L)          # free, row-major

    # Sublane tile: multiple of 8 (or full R), sized so one block is roughly
    # 1-2 MiB per channel-set; double-buffered in+out stays well under the
    # scoped-VMEM default on every TPU generation (incl. v7x's 64 MiB part).
    if R <= 8:
        ts = R
    else:
        ts = max(8, min((target_block_elems // L) // 8 * 8, (R // 8) * 8))
    grid_r = pl.cdiv(R, ts)

    out4 = pl.pallas_call(
        chacnn_kernel,
        out_shape=jax.ShapeDtypeStruct((b, c, R, L), x.dtype),
        grid_spec=pltpu.PrefetchScalarGridSpec(
            num_scalar_prefetch=4,                      # w1, b1, w2, b2 -> SMEM
            grid=(b, grid_r),
            in_specs=[pl.BlockSpec((None, c, ts, L),
                                   lambda bi, ri, *_: (bi, 0, ri, 0))],
            out_specs=pl.BlockSpec((None, c, ts, L),
                                   lambda bi, ri, *_: (bi, 0, ri, 0)),
        ),
        compiler_params=pltpu.CompilerParams(
            dimension_semantics=("parallel", "parallel")),
    )(w1, b1, w2, b2, x4)

    out3 = out4.reshape(b, c, Sp)
    if pad:
        out3 = out3[:, :, :S]
    return out3.reshape(b, c, h, w)


def _reference(x, w1, b1, w2, b2):
    b, c, h, w = x.shape
    xp = jnp.transpose(x, (0, 2, 3, 1)).reshape(b, -1, c)
    att = jnp.maximum(xp @ w1 + b1, 0.0) @ w2 + b2
    att = jnp.transpose(att.reshape(b, h, w, c), (0, 3, 1, 2))
    return x * att


if __name__ == "__main__":
    key = jax.random.PRNGKey(0)
    bsz, chans, H, W = 2, 4, 16, 16            # channels=4, channel_rate=1 -> mid=4
    channel_rate = 1
    mid = chans // channel_rate

    k_x, k_w1, k_b1, k_w2, k_b2 = jax.random.split(key, 5)
    x = jax.random.normal(k_x, (bsz, chans, H, W), dtype=jnp.float32)

    # torch Linear is y = x W^T + b; parameters stored pre-transposed as (in, out).
    w1 = jax.random.normal(k_w1, (chans, mid), dtype=jnp.float32) * 0.1
    b1 = jax.random.normal(k_b1, (mid,), dtype=jnp.float32) * 0.1
    w2 = jax.random.normal(k_w2, (mid, chans), dtype=jnp.float32) * 0.1
    b2 = jax.random.normal(k_b2, (chans,), dtype=jnp.float32) * 0.1

    out = chacnn_forward(x, w1, b1, w2, b2)
    out = jax.block_until_ready(out)

    ref = _reference(x, w1, b1, w2, b2)
    assert out.shape == (bsz, chans, H, W)
    assert jnp.allclose(out, ref, atol=1e-5, rtol=1e-5), "mismatch vs reference"

    print("KERNEL_OK")
</pallas_src>

<mosaic_0001>
module attributes {stable_mosaic.version = 11 : i64} {
  func.func @chacnn_kernel(%arg0: i32, %arg1: i32, %arg2: memref<4x4xf32, #tpu.memory_space<smem>>, %arg3: memref<4xf32, #tpu.memory_space<smem>>, %arg4: memref<4x4xf32, #tpu.memory_space<smem>>, %arg5: memref<4xf32, #tpu.memory_space<smem>>, %arg6: memref<1x4x1x256xf32, #tpu.memory_space<vmem>>, %arg7: memref<1x4x1x256xf32, #tpu.memory_space<vmem>>) attributes {dimension_semantics = [#tpu.dimension_semantics<parallel>, #tpu.dimension_semantics<parallel>], iteration_bounds = array<i64: 2, 1>, scalar_prefetch = 4 : i64, scratch_operands = 0 : i64, tpu.core_type = #tpu.core_type<tc>, window_params = [{transform_indices = @transform_0, window_bounds = array<i64: 1, 4, 1, 256>}, {transform_indices = @transform_1, window_bounds = array<i64: 1, 4, 1, 256>}]} {
    %c0 = arith.constant 0 : index
    %c0_0 = arith.constant 0 : index
    %c0_1 = arith.constant 0 : index
    %c0_2 = arith.constant 0 : index
    %0 = vector.load %arg6[%c0, %c0_0, %c0_1, %c0_2] : memref<1x4x1x256xf32, #tpu.memory_space<vmem>>, vector<1x1x1x256xf32>
    %1 = vector.shape_cast %0 : vector<1x1x1x256xf32> to vector<1x256xf32>
    %c0_3 = arith.constant 0 : index
    %c1 = arith.constant 1 : index
    %c0_4 = arith.constant 0 : index
    %c0_5 = arith.constant 0 : index
    %2 = vector.load %arg6[%c0_3, %c1, %c0_4, %c0_5] : memref<1x4x1x256xf32, #tpu.memory_space<vmem>>, vector<1x1x1x256xf32>
    %3 = vector.shape_cast %2 : vector<1x1x1x256xf32> to vector<1x256xf32>
    %c0_6 = arith.constant 0 : index
    %c2 = arith.constant 2 : index
    %c0_7 = arith.constant 0 : index
    %c0_8 = arith.constant 0 : index
    %4 = vector.load %arg6[%c0_6, %c2, %c0_7, %c0_8] : memref<1x4x1x256xf32, #tpu.memory_space<vmem>>, vector<1x1x1x256xf32>
    %5 = vector.shape_cast %4 : vector<1x1x1x256xf32> to vector<1x256xf32>
    %c0_9 = arith.constant 0 : index
    %c3 = arith.constant 3 : index
    %c0_10 = arith.constant 0 : index
    %c0_11 = arith.constant 0 : index
    %6 = vector.load %arg6[%c0_9, %c3, %c0_10, %c0_11] : memref<1x4x1x256xf32, #tpu.memory_space<vmem>>, vector<1x1x1x256xf32>
    %7 = vector.shape_cast %6 : vector<1x1x1x256xf32> to vector<1x256xf32>
    %c0_12 = arith.constant 0 : index
    %c0_13 = arith.constant 0 : index
    %8 = memref.load %arg2[%c0_12, %c0_13] : memref<4x4xf32, #tpu.memory_space<smem>>
    %9 = vector.broadcast %8 : f32 to vector<1x256xf32>
    %10 = arith.mulf %1, %9 : vector<1x256xf32>
    %c1_14 = arith.constant 1 : index
    %c0_15 = arith.constant 0 : index
    %11 = memref.load %arg2[%c1_14, %c0_15] : memref<4x4xf32, #tpu.memory_space<smem>>
    %12 = vector.broadcast %11 : f32 to vector<1x256xf32>
    %13 = arith.mulf %3, %12 : vector<1x256xf32>
    %14 = arith.addf %10, %13 : vector<1x256xf32>
    %c2_16 = arith.constant 2 : index
    %c0_17 = arith.constant 0 : index
    %15 = memref.load %arg2[%c2_16, %c0_17] : memref<4x4xf32, #tpu.memory_space<smem>>
    %16 = vector.broadcast %15 : f32 to vector<1x256xf32>
    %17 = arith.mulf %5, %16 : vector<1x256xf32>
    %18 = arith.addf %14, %17 : vector<1x256xf32>
    %c3_18 = arith.constant 3 : index
    %c0_19 = arith.constant 0 : index
    %19 = memref.load %arg2[%c3_18, %c0_19] : memref<4x4xf32, #tpu.memory_space<smem>>
    %20 = vector.broadcast %19 : f32 to vector<1x256xf32>
    %21 = arith.mulf %7, %20 : vector<1x256xf32>
    %22 = arith.addf %18, %21 : vector<1x256xf32>
    %c0_20 = arith.constant 0 : index
    %23 = memref.load %arg3[%c0_20] : memref<4xf32, #tpu.memory_space<smem>>
    %24 = vector.broadcast %23 : f32 to vector<1x256xf32>
    %25 = arith.addf %22, %24 : vector<1x256xf32>
    %cst = arith.constant 0.000000e+00 : f32
    %26 = vector.broadcast %cst : f32 to vector<1x256xf32>
    %27 = arith.maximumf %25, %26 : vector<1x256xf32>
    %c0_21 = arith.constant 0 : index
    %c1_22 = arith.constant 1 : index
    %28 = memref.load %arg2[%c0_21, %c1_22] : memref<4x4xf32, #tpu.memory_space<smem>>
    %29 = vector.broadcast %28 : f32 to vector<1x256xf32>
    %30 = arith.mulf %1, %29 : vector<1x256xf32>
    %c1_23 = arith.constant 1 : index
    %c1_24 = arith.constant 1 : index
    %31 = memref.load %arg2[%c1_23, %c1_24] : memref<4x4xf32, #tpu.memory_space<smem>>
    %32 = vector.broadcast %31 : f32 to vector<1x256xf32>
    %33 = arith.mulf %3, %32 : vector<1x256xf32>
    %34 = arith.addf %30, %33 : vector<1x256xf32>
    %c2_25 = arith.constant 2 : index
    %c1_26 = arith.constant 1 : index
    %35 = memref.load %arg2[%c2_25, %c1_26] : memref<4x4xf32, #tpu.memory_space<smem>>
    %36 = vector.broadcast %35 : f32 to vector<1x256xf32>
    %37 = arith.mulf %5, %36 : vector<1x256xf32>
    %38 = arith.addf %34, %37 : vector<1x256xf32>
    %c3_27 = arith.constant 3 : index
    %c1_28 = arith.constant 1 : index
    %39 = memref.load %arg2[%c3_27, %c1_28] : memref<4x4xf32, #tpu.memory_space<smem>>
    %40 = vector.broadcast %39 : f32 to vector<1x256xf32>
    %41 = arith.mulf %7, %40 : vector<1x256xf32>
    %42 = arith.addf %38, %41 : vector<1x256xf32>
    %c1_29 = arith.constant 1 : index
    %43 = memref.load %arg3[%c1_29] : memref<4xf32, #tpu.memory_space<smem>>
    %44 = vector.broadcast %43 : f32 to vector<1x256xf32>
    %45 = arith.addf %42, %44 : vector<1x256xf32>
    %cst_30 = arith.constant 0.000000e+00 : f32
    %46 = vector.broadcast %cst_30 : f32 to vector<1x256xf32>
    %47 = arith.maximumf %45, %46 : vector<1x256xf32>
    %c0_31 = arith.constant 0 : index
    %c2_32 = arith.constant 2 : index
    %48 = memref.load %arg2[%c0_31, %c2_32] : memref<4x4xf32, #tpu.memory_space<smem>>
    %49 = vector.broadcast %48 : f32 to vector<1x256xf32>
    %50 = arith.mulf %1, %49 : vector<1x256xf32>
    %c1_33 = arith.constant 1 : index
    %c2_34 = arith.constant 2 : index
    %51 = memref.load %arg2[%c1_33, %c2_34] : memref<4x4xf32, #tpu.memory_space<smem>>
    %52 = vector.broadcast %51 : f32 to vector<1x256xf32>
    %53 = arith.mulf %3, %52 : vector<1x256xf32>
    %54 = arith.addf %50, %53 : vector<1x256xf32>
    %c2_35 = arith.constant 2 : index
    %c2_36 = arith.constant 2 : index
    %55 = memref.load %arg2[%c2_35, %c2_36] : memref<4x4xf32, #tpu.memory_space<smem>>
    %56 = vector.broadcast %55 : f32 to vector<1x256xf32>
    %57 = arith.mulf %5, %56 : vector<1x256xf32>
    %58 = arith.addf %54, %57 : vector<1x256xf32>
    %c3_37 = arith.constant 3 : index
    %c2_38 = arith.constant 2 : index
    %59 = memref.load %arg2[%c3_37, %c2_38] : memref<4x4xf32, #tpu.memory_space<smem>>
    %60 = vector.broadcast %59 : f32 to vector<1x256xf32>
    %61 = arith.mulf %7, %60 : vector<1x256xf32>
    %62 = arith.addf %58, %61 : vector<1x256xf32>
    %c2_39 = arith.constant 2 : index
    %63 = memref.load %arg3[%c2_39] : memref<4xf32, #tpu.memory_space<smem>>
    %64 = vector.broadcast %63 : f32 to vector<1x256xf32>
    %65 = arith.addf %62, %64 : vector<1x256xf32>
    %cst_40 = arith.constant 0.000000e+00 : f32
    %66 = vector.broadcast %cst_40 : f32 to vector<1x256xf32>
    %67 = arith.maximumf %65, %66 : vector<1x256xf32>
    %c0_41 = arith.constant 0 : index
    %c3_42 = arith.constant 3 : index
    %68 = memref.load %arg2[%c0_41, %c3_42] : memref<4x4xf32, #tpu.memory_space<smem>>
    %69 = vector.broadcast %68 : f32 to vector<1x256xf32>
    %70 = arith.mulf %1, %69 : vector<1x256xf32>
    %c1_43 = arith.constant 1 : index
    %c3_44 = arith.constant 3 : index
    %71 = memref.load %arg2[%c1_43, %c3_44] : memref<4x4xf32, #tpu.memory_space<smem>>
    %72 = vector.broadcast %71 : f32 to vector<1x256xf32>
    %73 = arith.mulf %3, %72 : vector<1x256xf32>
    %74 = arith.addf %70, %73 : vector<1x256xf32>
    %c2_45 = arith.constant 2 : index
    %c3_46 = arith.constant 3 : index
    %75 = memref.load %arg2[%c2_45, %c3_46] : memref<4x4xf32, #tpu.memory_space<smem>>
    %76 = vector.broadcast %75 : f32 to vector<1x256xf32>
    %77 = arith.mulf %5, %76 : vector<1x256xf32>
    %78 = arith.addf %74, %77 : vector<1x256xf32>
    %c3_47 = arith.constant 3 : index
    %c3_48 = arith.constant 3 : index
    %79 = memref.load %arg2[%c3_47, %c3_48] : memref<4x4xf32, #tpu.memory_space<smem>>
    %80 = vector.broadcast %79 : f32 to vector<1x256xf32>
    %81 = arith.mulf %7, %80 : vector<1x256xf32>
    %82 = arith.addf %78, %81 : vector<1x256xf32>
    %c3_49 = arith.constant 3 : index
    %83 = memref.load %arg3[%c3_49] : memref<4xf32, #tpu.memory_space<smem>>
    %84 = vector.broadcast %83 : f32 to vector<1x256xf32>
    %85 = arith.addf %82, %84 : vector<1x256xf32>
    %cst_50 = arith.constant 0.000000e+00 : f32
    %86 = vector.broadcast %cst_50 : f32 to vector<1x256xf32>
    %87 = arith.maximumf %85, %86 : vector<1x256xf32>
    %c0_51 = arith.constant 0 : index
    %c0_52 = arith.constant 0 : index
    %88 = memref.load %arg4[%c0_51, %c0_52] : memref<4x4xf32, #tpu.memory_space<smem>>
    %89 = vector.broadcast %88 : f32 to vector<1x256xf32>
    %90 = arith.mulf %27, %89 : vector<1x256xf32>
    %c1_53 = arith.constant 1 : index
    %c0_54 = arith.constant 0 : index
    %91 = memref.load %arg4[%c1_53, %c0_54] : memref<4x4xf32, #tpu.memory_space<smem>>
    %92 = vector.broadcast %91 : f32 to vector<1x256xf32>
    %93 = arith.mulf %47, %92 : vector<1x256xf32>
    %94 = arith.addf %90, %93 : vector<1x256xf32>
    %c2_55 = arith.constant 2 : index
    %c0_56 = arith.constant 0 : index
    %95 = memref.load %arg4[%c2_55, %c0_56] : memref<4x4xf32, #tpu.memory_space<smem>>
    %96 = vector.broadcast %95 : f32 to vector<1x256xf32>
    %97 = arith.mulf %67, %96 : vector<1x256xf32>
    %98 = arith.addf %94, %97 : vector<1x256xf32>
    %c3_57 = arith.constant 3 : index
    %c0_58 = arith.constant 0 : index
    %99 = memref.load %arg4[%c3_57, %c0_58] : memref<4x4xf32, #tpu.memory_space<smem>>
    %100 = vector.broadcast %99 : f32 to vector<1x256xf32>
    %101 = arith.mulf %87, %100 : vector<1x256xf32>
    %102 = arith.addf %98, %101 : vector<1x256xf32>
    %c0_59 = arith.constant 0 : index
    %103 = memref.load %arg5[%c0_59] : memref<4xf32, #tpu.memory_space<smem>>
    %104 = vector.broadcast %103 : f32 to vector<1x256xf32>
    %105 = arith.addf %102, %104 : vector<1x256xf32>
    %106 = arith.mulf %1, %105 : vector<1x256xf32>
    %c0_60 = arith.constant 0 : index
    %c0_61 = arith.constant 0 : index
    %c0_62 = arith.constant 0 : index
    %c0_63 = arith.constant 0 : index
    %107 = vector.load %arg7[%c0_60, %c0_61, %c0_62, %c0_63] : memref<1x4x1x256xf32, #tpu.memory_space<vmem>>, vector<1x1x1x256xf32>
    %108 = vector.shape_cast %107 : vector<1x1x1x256xf32> to vector<1x256xf32>
    %109 = vector.shape_cast %106 : vector<1x256xf32> to vector<1x1x1x256xf32>
    tpu.vector_store %arg7[%c0_60, %c0_61, %c0_62, %c0_63], %109 {strides = array<i32>} : memref<1x4x1x256xf32, #tpu.memory_space<vmem>>, vector<1x1x1x256xf32>,
    %c0_64 = arith.constant 0 : index
    %c1_65 = arith.constant 1 : index
    %110 = memref.load %arg4[%c0_64, %c1_65] : memref<4x4xf32, #tpu.memory_space<smem>>
    %111 = vector.broadcast %110 : f32 to vector<1x256xf32>
    %112 = arith.mulf %27, %111 : vector<1x256xf32>
    %c1_66 = arith.constant 1 : index
    %c1_67 = arith.constant 1 : index
    %113 = memref.load %arg4[%c1_66, %c1_67] : memref<4x4xf32, #tpu.memory_space<smem>>
    %114 = vector.broadcast %113 : f32 to vector<1x256xf32>
    %115 = arith.mulf %47, %114 : vector<1x256xf32>
    %116 = arith.addf %112, %115 : vector<1x256xf32>
    %c2_68 = arith.constant 2 : index
    %c1_69 = arith.constant 1 : index
    %117 = memref.load %arg4[%c2_68, %c1_69] : memref<4x4xf32, #tpu.memory_space<smem>>
    %118 = vector.broadcast %117 : f32 to vector<1x256xf32>
    %119 = arith.mulf %67, %118 : vector<1x256xf32>
    %120 = arith.addf %116, %119 : vector<1x256xf32>
    %c3_70 = arith.constant 3 : index
    %c1_71 = arith.constant 1 : index
    %121 = memref.load %arg4[%c3_70, %c1_71] : memref<4x4xf32, #tpu.memory_space<smem>>
    %122 = vector.broadcast %121 : f32 to vector<1x256xf32>
    %123 = arith.mulf %87, %122 : vector<1x256xf32>
    %124 = arith.addf %120, %123 : vector<1x256xf32>
    %c1_72 = arith.constant 1 : index
    %125 = memref.load %arg5[%c1_72] : memref<4xf32, #tpu.memory_space<smem>>
    %126 = vector.broadcast %125 : f32 to vector<1x256xf32>
    %127 = arith.addf %124, %126 : vector<1x256xf32>
    %128 = arith.mulf %3, %127 : vector<1x256xf32>
    %c0_73 = arith.constant 0 : index
    %c1_74 = arith.constant 1 : index
    %c0_75 = arith.constant 0 : index
    %c0_76 = arith.constant 0 : index
    %129 = vector.load %arg7[%c0_73, %c1_74, %c0_75, %c0_76] : memref<1x4x1x256xf32, #tpu.memory_space<vmem>>, vector<1x1x1x256xf32>
    %130 = vector.shape_cast %129 : vector<1x1x1x256xf32> to vector<1x256xf32>
    %131 = vector.shape_cast %128 : vector<1x256xf32> to vector<1x1x1x256xf32>
    tpu.vector_store %arg7[%c0_73, %c1_74, %c0_75, %c0_76], %131 {strides = array<i32>} : memref<1x4x1x256xf32, #tpu.memory_space<vmem>>, vector<1x1x1x256xf32>,
    %c0_77 = arith.constant 0 : index
    %c2_78 = arith.constant 2 : index
    %132 = memref.load %arg4[%c0_77, %c2_78] : memref<4x4xf32, #tpu.memory_space<smem>>
    %133 = vector.broadcast %132 : f32 to vector<1x256xf32>
    %134 = arith.mulf %27, %133 : vector<1x256xf32>
    %c1_79 = arith.constant 1 : index
    %c2_80 = arith.constant 2 : index
    %135 = memref.load %arg4[%c1_79, %c2_80] : memref<4x4xf32, #tpu.memory_space<smem>>
    %136 = vector.broadcast %135 : f32 to vector<1x256xf32>
    %137 = arith.mulf %47, %136 : vector<1x256xf32>
    %138 = arith.addf %134, %137 : vector<1x256xf32>
    %c2_81 = arith.constant 2 : index
    %c2_82 = arith.constant 2 : index
    %139 = memref.load %arg4[%c2_81, %c2_82] : memref<4x4xf32, #tpu.memory_space<smem>>
    %140 = vector.broadcast %139 : f32 to vector<1x256xf32>
    %141 = arith.mulf %67, %140 : vector<1x256xf32>
    %142 = arith.addf %138, %141 : vector<1x256xf32>
    %c3_83 = arith.constant 3 : index
    %c2_84 = arith.constant 2 : index
    %143 = memref.load %arg4[%c3_83, %c2_84] : memref<4x4xf32, #tpu.memory_space<smem>>
    %144 = vector.broadcast %143 : f32 to vector<1x256xf32>
    %145 = arith.mulf %87, %144 : vector<1x256xf32>
    %146 = arith.addf %142, %145 : vector<1x256xf32>
    %c2_85 = arith.constant 2 : index
    %147 = memref.load %arg5[%c2_85] : memref<4xf32, #tpu.memory_space<smem>>
    %148 = vector.broadcast %147 : f32 to vector<1x256xf32>
    %149 = arith.addf %146, %148 : vector<1x256xf32>
    %150 = arith.mulf %5, %149 : vector<1x256xf32>
    %c0_86 = arith.constant 0 : index
    %c2_87 = arith.constant 2 : index
    %c0_88 = arith.constant 0 : index
    %c0_89 = arith.constant 0 : index
    %151 = vector.load %arg7[%c0_86, %c2_87, %c0_88, %c0_89] : memref<1x4x1x256xf32, #tpu.memory_space<vmem>>, vector<1x1x1x256xf32>
    %152 = vector.shape_cast %151 : vector<1x1x1x256xf32> to vector<1x256xf32>
    %153 = vector.shape_cast %150 : vector<1x256xf32> to vector<1x1x1x256xf32>
    tpu.vector_store %arg7[%c0_86, %c2_87, %c0_88, %c0_89], %153 {strides = array<i32>} : memref<1x4x1x256xf32, #tpu.memory_space<vmem>>, vector<1x1x1x256xf32>,
    %c0_90 = arith.constant 0 : index
    %c3_91 = arith.constant 3 : index
    %154 = memref.load %arg4[%c0_90, %c3_91] : memref<4x4xf32, #tpu.memory_space<smem>>
    %155 = vector.broadcast %154 : f32 to vector<1x256xf32>
    %156 = arith.mulf %27, %155 : vector<1x256xf32>
    %c1_92 = arith.constant 1 : index
    %c3_93 = arith.constant 3 : index
    %157 = memref.load %arg4[%c1_92, %c3_93] : memref<4x4xf32, #tpu.memory_space<smem>>
    %158 = vector.broadcast %157 : f32 to vector<1x256xf32>
    %159 = arith.mulf %47, %158 : vector<1x256xf32>
    %160 = arith.addf %156, %159 : vector<1x256xf32>
    %c2_94 = arith.constant 2 : index
    %c3_95 = arith.constant 3 : index
    %161 = memref.load %arg4[%c2_94, %c3_95] : memref<4x4xf32, #tpu.memory_space<smem>>
    %162 = vector.broadcast %161 : f32 to vector<1x256xf32>
    %163 = arith.mulf %67, %162 : vector<1x256xf32>
    %164 = arith.addf %160, %163 : vector<1x256xf32>
    %c3_96 = arith.constant 3 : index
    %c3_97 = arith.constant 3 : index
    %165 = memref.load %arg4[%c3_96, %c3_97] : memref<4x4xf32, #tpu.memory_space<smem>>
    %166 = vector.broadcast %165 : f32 to vector<1x256xf32>
    %167 = arith.mulf %87, %166 : vector<1x256xf32>
    %168 = arith.addf %164, %167 : vector<1x256xf32>
    %c3_98 = arith.constant 3 : index
    %169 = memref.load %arg5[%c3_98] : memref<4xf32, #tpu.memory_space<smem>>
    %170 = vector.broadcast %169 : f32 to vector<1x256xf32>
    %171 = arith.addf %168, %170 : vector<1x256xf32>
    %172 = arith.mulf %7, %171 : vector<1x256xf32>
    %c0_99 = arith.constant 0 : index
    %c3_100 = arith.constant 3 : index
    %c0_101 = arith.constant 0 : index
    %c0_102 = arith.constant 0 : index
    %173 = vector.load %arg7[%c0_99, %c3_100, %c0_101, %c0_102] : memref<1x4x1x256xf32, #tpu.memory_space<vmem>>, vector<1x1x1x256xf32>
    %174 = vector.shape_cast %173 : vector<1x1x1x256xf32> to vector<1x256xf32>
    %175 = vector.shape_cast %172 : vector<1x256xf32> to vector<1x1x1x256xf32>
    tpu.vector_store %arg7[%c0_99, %c3_100, %c0_101, %c0_102], %175 {strides = array<i32>} : memref<1x4x1x256xf32, #tpu.memory_space<vmem>>, vector<1x1x1x256xf32>,
    return
  }
  func.func @transform_0(%arg0: i32, %arg1: i32, %arg2: memref<4x4xf32, #tpu.memory_space<smem>>, %arg3: memref<4xf32, #tpu.memory_space<smem>>, %arg4: memref<4x4xf32, #tpu.memory_space<smem>>, %arg5: memref<4xf32, #tpu.memory_space<smem>>) -> (i32, i32, i32, i32) {
    %c0_i32 = arith.constant 0 : i32
    %c0_i32_0 = arith.constant 0 : i32
    %c0_i32_1 = arith.constant 0 : i32
    return %arg0, %c0_i32, %arg1, %c0_i32_0 : i32, i32, i32, i32
  }
  func.func @transform_1(%arg0: i32, %arg1: i32, %arg2: memref<4x4xf32, #tpu.memory_space<smem>>, %arg3: memref<4xf32, #tpu.memory_space<smem>>, %arg4: memref<4x4xf32, #tpu.memory_space<smem>>, %arg5: memref<4xf32, #tpu.memory_space<smem>>) -> (i32, i32, i32, i32) {
    %c0_i32 = arith.constant 0 : i32
    %c0_i32_0 = arith.constant 0 : i32
    %c0_i32_1 = arith.constant 0 : i32
    return %arg0, %c0_i32, %arg1, %c0_i32_0 : i32, i32, i32, i32
  }
}

</mosaic_0001>

<llo_original>
// kernel: tpu_custom_call.1
$region0: #{tpu_custom_call.1}
  #allocation0 [shape = 'u32[]', space=smem, size = 0x4, offset = 0x4, fixed_abs, tag = 'smem constant byte address 0x4 - core index']
  #allocation1 [shape = 'u32[72,128]{1,0:T(1,128)}', space=vmem, size = 0x9000, scoped, tag = 'internal scratch']
  #allocation2 [shape = 's32[1]{0}', space=sflag, size = 0x4, scoped, tag = 'scoped memory for tpu_custom_call.1']
  #allocation3 [shape = 'u8[2048]{0}', space=smem, size = 0x800, scoped, tag = 'prefetched SMEM operand 0']
  #allocation4 [shape = 'u8[512]{0}', space=smem, size = 0x200, scoped, tag = 'prefetched SMEM operand 1']
  #allocation5 [shape = 'u8[2048]{0}', space=smem, size = 0x800, scoped, tag = 'prefetched SMEM operand 2']
  #allocation6 [shape = 'u8[512]{0}', space=smem, size = 0x200, scoped, tag = 'prefetched SMEM operand 3']
  %s0 = inlined_call_operand.hbm [shape: f32[4,4], index: 0, kind: input, shape index: {}]
  %s1 = inlined_call_operand.hbm [shape: f32[4], index: 1, kind: input, shape index: {}]
  %s2 = inlined_call_operand.hbm [shape: f32[4,4], index: 2, kind: input, shape index: {}]
  %s3 = inlined_call_operand.vmem [shape: f32[4], index: 3, kind: input, shape index: {}]
  %s4 = inlined_call_operand.hbm [shape: f32[2,4,1,256], index: 4, kind: input, shape index: {}]
  %s5 = inlined_call_operand.hbm [shape: f32[2,4,1,256], index: 5, kind: output, shape index: {}]
  %s6 = sld [smem:[#allocation0]]
  $region41: #{tpu_custom_call.1} parent=0
    _
  %s8 = ssub.s32 1, %s6
  %s9 = scalar_select 0, %s8, %s6
  %s11 = sshll.u32 %s0, 4
  %s12 = int_to_ptr.hbm [resolvable:$true] %s11
  %14 = dma.hbm_to_smem %s12, 64, [#allocation3], [#allocation2]
  %s16 = sshll.u32 %s1, 4
  %s17 = int_to_ptr.hbm [resolvable:$true] %s16
  %19 = dma.hbm_to_smem %s17, 16, [#allocation4], [#allocation2]
  %s21 = sshll.u32 %s2, 4
  %s22 = int_to_ptr.hbm [resolvable:$true] %s21
  %24 = dma.hbm_to_smem %s22, 64, [#allocation5], [#allocation2]
  %s26 = sshll.u32 %s3, 4
  %s27 = int_to_ptr.vmem [resolvable:$true] %s26
  %29 = dma.vmem_to_smem %s27, 16, [#allocation6], [#allocation2]
  %31 = dma.done [#allocation2], 160
  %32 = sfence
  $region1: #{tpu_custom_call.1} parent=0
    #allocation7 [shape = 'u8[8192]{0}', space=vmem, size = 0x2000, scoped, tag = 'input window, operand 4']
    #allocation8 [shape = 's32[2]{0}', space=sflag, size = 0x8, scoped, tag = 'scoped memory for tpu_custom_call.1']
    #allocation9 [shape = 's32[2]{0}', space=sflag, size = 0x8, scoped, tag = 'scoped memory for tpu_custom_call.1']
    #allocation10 [shape = 'u8[8192]{0}', space=vmem, size = 0x2000, scoped, tag = 'output window, operand 0']
    %33 = vsyncpa [#allocation8], 0
    %s34 = scalar_lea.sflag [#allocation8], 1
    %35 = vsyncpa %s34, 0
    %36 = vsyncpa [#allocation9], 0
    %s37 = scalar_lea.sflag [#allocation9], 1
    %38 = vsyncpa %s37, 0
    loop: start=0, step=1, limit=4
    $region2: #{tpu_custom_call.1} parent=1 // loop_pre_header
      _
    $region3: #{tpu_custom_call.1} parent=1 // loop_header
      %s40 = sphi 0, %s44
      %p41 = scmp.ge.s32.totalorder %s40, 4
      %s47 = sphi 0, %s59
      %s48 = sphi 0, %s55
      %s49 = sphi 0, %s47
      %s50 = sphi 0, %s48
      %s51 = sphi 0, %s49
      %s52 = sphi 0, %s50
      %s64 = sphi 0, %s66
      %s67 = sphi 0, %s64
      %s68 = sphi 0, %s67
      %s84 = sphi 0, %s68
      %s92 = sphi 0, %s94
      %s95 = sphi 0, %s92
      %s96 = sphi 0, %s95
      %s112 = sphi 0, %s96
    $region4: #{tpu_custom_call.1} parent=1 // loop_header_branch
      %43 = sbr.rel (%p41) target = $region8
    $region5: #{tpu_custom_call.1} parent=1 // loop_body
      %s45 = ssub.s32 %s40, 1
      %s46 = ssub.s32 %s40, 2
      %s53 = sadd.s32 1, %s48
      %p54 = scmp.ge.s32.totalorder %s53, 1
      %s55 = scalar_select %p54, 0, %s53
      %s56 = sadd.s32 1, %s47
      %s57 = scalar_select %p54, %s56, %s47
      %p58 = scmp.ge.s32.totalorder %s57, 2
      %s59 = scalar_select %p58, 0, %s57
      %s60 = ssub.s32 %s47, %s59
      %s61 = ssub.s32 %s48, %s55
      %s62 = sor.u32 %s60, %s61
      %p63 = scmp.eq.s32.totalorder %s62, 0
      %s65 = sadd.s32 %s64, 1
      %s66 = scalar_select %p63, %s64, %s65
      %p69 = pneg %p63
      %p70 = scmp.eq.s32.totalorder %s40, 1
      %p71 = por %p69, %p70
      %p72 = scmp.ne.s32.totalorder %s64, %s67
      %p73 = scmp.eq.s32.totalorder %s40, 0
      %p74 = por %p72, %p73
      %p75 = scmp.ne.s32.totalorder %s64, %s67
      %p76 = scmp.eq.s32.totalorder %s45, 1
      %p77 = por %p75, %p76
      %p78 = scmp.ne.s32.totalorder %s67, %s68
      %p79 = scmp.eq.s32.totalorder %s45, 0
      %p80 = por %p78, %p79
      %p81 = scmp.ne.s32.totalorder %s67, %s68
      %p82 = scmp.eq.s32.totalorder %s46, 1
      %p83 = por %p81, %p82
      %p85 = scmp.ne.s32.totalorder %s68, %s84
      %p86 = scmp.eq.s32.totalorder %s46, 0
      %p87 = por %p85, %p86
      %s88 = ssub.s32 %s47, %s59
      %s89 = ssub.s32 %s48, %s55
      %s90 = sor.u32 %s88, %s89
      %p91 = scmp.eq.s32.totalorder %s90, 0
      %s93 = sadd.s32 %s92, 1
      %s94 = scalar_select %p91, %s92, %s93
      %p97 = pneg %p91
      %p98 = scmp.eq.s32.totalorder %s40, 1
      %p99 = por %p97, %p98
      %p100 = scmp.ne.s32.totalorder %s92, %s95
      %p101 = scmp.eq.s32.totalorder %s40, 0
      %p102 = por %p100, %p101
      %p103 = scmp.ne.s32.totalorder %s92, %s95
      %p104 = scmp.eq.s32.totalorder %s45, 1
      %p105 = por %p103, %p104
      %p106 = scmp.ne.s32.totalorder %s95, %s96
      %p107 = scmp.eq.s32.totalorder %s45, 0
      %p108 = por %p106, %p107
      %p109 = scmp.ne.s32.totalorder %s95, %s96
      %p110 = scmp.eq.s32.totalorder %s46, 1
      %p111 = por %p109, %p110
      %p113 = scmp.ne.s32.totalorder %s96, %s112
      %p114 = scmp.eq.s32.totalorder %s46, 0
      %p115 = por %p113, %p114
      %p116 = scmp.le.s32.totalorder 1, %s40
      %p117 = scmp.lt.s32.totalorder %s40, 3
      %p118 = pnand %p116, %p117
      %p119 = pneg %p118
      // Predicated region
      $region9: #{tpu_custom_call.1} parent=5 // pred_check
        _
      $region10: #{tpu_custom_call.1} parent=5 // pred_check_branch
        %121 = sbr.rel (%p118) target = $region12
      $region11: #{tpu_custom_call.1} parent=5 // pred_region
        %s122 = ssub.s32 %s40, 1
      $region12: #{tpu_custom_call.1} parent=5 // pred_fallthru
        _
      %p123 = scmp.lt.s32.totalorder %s40, 2
      // Predicated region
      $region13: #{tpu_custom_call.1} parent=5 // pred_check
        %p124 = pneg %p123
      $region14: #{tpu_custom_call.1} parent=5 // pred_check_branch
        %126 = sbr.rel (%p124) target = $region16
      $region15: #{tpu_custom_call.1} parent=5 // pred_region
        // Predicated region
        $region17: #{tpu_custom_call.1} parent=15 // pred_check
          %p127 = pneg %p74
        $region18: #{tpu_custom_call.1} parent=15 // pred_check_branch
          %129 = sbr.rel (%p127) target = $region20
        $region19: #{tpu_custom_call.1} parent=15 // pred_region
          %s130 = sand.u32 %s64, 1
          %s131 = scalar_lea.sflag [#allocation8], %s130
          %s132 = sand.u32 %s64, 1
          %s133 = smul.addr %s132, 8
          %s134 = scalar_lea.vmem [#allocation7], %s133
          %136 = vsyncadd %s131, 0
          %s137 = smul.addr %s48, 2
          %s138 = smul.addr %s47, 8
          %s139 = sadd.s32 %s137, %s138
          %s140 = scalar_lea.hbm %s4, %s139
          %s141 = sshll.u32 %s140, 4
          %s142 = int_to_ptr.hbm [resolvable:$true] %s141
          %s143 = sshll.u32 %s134, 4
          %s144 = int_to_ptr.vmem [resolvable:$true] %s143
          %149 = dma.hbm_to_vmem [thread:$0]  %s142, 128, %s144, %s131, 32, 32, 2
        $region20: #{tpu_custom_call.1} parent=15 // pred_fallthru
          _
      $region16: #{tpu_custom_call.1} parent=5 // pred_fallthru
        _
      %p150 = scmp.le.s32.totalorder 1, %s40
      %p151 = scmp.lt.s32.totalorder %s40, 3
      %p152 = pnand %p150, %p151
      %p153 = pneg %p152
      // Predicated region
      $region21: #{tpu_custom_call.1} parent=5 // pred_check
        _
      $region22: #{tpu_custom_call.1} parent=5 // pred_check_branch
        %155 = sbr.rel (%p152) target = $region24
      $region23: #{tpu_custom_call.1} parent=5 // pred_region
        %s156 = ssub.s32 %s40, 1
        %s157 = sand.u32 %s67, 1
        %s158 = scalar_lea.sflag [#allocation8], %s157
        %s159 = sand.u32 %s67, 1
        %s160 = smul.addr %s159, 8
        %s161 = scalar_lea.vmem [#allocation7], %s160
        // Predicated region
        $region25: #{tpu_custom_call.1} parent=23 // pred_check
          %p162 = pneg %p80
        $region26: #{tpu_custom_call.1} parent=23 // pred_check_branch
          %164 = sbr.rel (%p162) target = $region28
        $region27: #{tpu_custom_call.1} parent=23 // pred_region
          %166 = dma.done %s158, 128
        $region28: #{tpu_custom_call.1} parent=23 // pred_fallthru
          _
        %s167 = sand.u32 %s67, 1
        %s168 = scalar_lea.sflag [#allocation8], %s167
        %s169 = sand.u32 %s67, 1
        %s170 = smul.addr %s169, 8
        %s171 = scalar_lea.vmem [#allocation7], %s170
        %p172 = pneg %p80
        %p173 = pneg %p77
        %p174 = pneg %p108
        %p175 = pneg %p105
        %s176 = sand.u32 %s95, 1
        %s177 = scalar_lea.sflag [#allocation9], %s176
        %s178 = sand.u32 %s95, 1
        %s179 = smul.addr %s178, 8
        %s180 = scalar_lea.vmem [#allocation10], %s179
        %v181 = vld [vmem:[%s161] sm:$0x3]
        %s182 = scalar_lea.vmem %s161, 2 [#allocation7]
        %v183 = vld [vmem:[%s182] sm:$0x3]
        %s184 = scalar_lea.vmem %s161, 4 [#allocation7]
        %v185 = vld [vmem:[%s184] sm:$0x3]
        %s186 = scalar_lea.vmem %s161, 6 [#allocation7]
        %v187 = vld [vmem:[%s186] sm:$0x3]
        %s188 = sld [smem:[#allocation3]]
        %v189 = vstv %s188
        %v190 = vmul.f32 %v181, %v189
        %s191 = sld [smem:[#allocation3 + $0x80]]
        %v192 = vstv %s191
        %v193 = vmul.f32 %v183, %v192
        %v194 = vadd.f32 %v190, %v193
        %s195 = sld [smem:[#allocation3 + $0x100]]
        %v196 = vstv %s195
        %v197 = vmul.f32 %v185, %v196
        %v198 = vadd.f32 %v194, %v197
        %s199 = sld [smem:[#allocation3 + $0x180]]
        %v200 = vstv %s199
        %v201 = vmul.f32 %v187, %v200
        %v202 = vadd.f32 %v198, %v201
        %s203 = sld [smem:[#allocation4]]
        %v204 = vstv %s203
        %v205 = vadd.f32 %v202, %v204
        %v206 = vmax.f32 %v205, 0.0
        %s207 = sld [smem:[#allocation3 + $0x1]]
        %v208 = vstv %s207
        %v209 = vmul.f32 %v181, %v208
        %s210 = sld [smem:[#allocation3 + $0x81]]
        %v211 = vstv %s210
        %v212 = vmul.f32 %v183, %v211
        %v213 = vadd.f32 %v209, %v212
        %s214 = sld [smem:[#allocation3 + $0x101]]
        %v215 = vstv %s214
        %v216 = vmul.f32 %v185, %v215
        %v217 = vadd.f32 %v213, %v216
        %s218 = sld [smem:[#allocation3 + $0x181]]
        %v219 = vstv %s218
        %v220 = vmul.f32 %v187, %v219
        %v221 = vadd.f32 %v217, %v220
        %s222 = sld [smem:[#allocation4 + $0x1]]
        %v223 = vstv %s222
        %v224 = vadd.f32 %v221, %v223
        %v225 = vmax.f32 %v224, 0.0
        %s226 = sld [smem:[#allocation3 + $0x2]]
        %v227 = vstv %s226
        %v228 = vmul.f32 %v181, %v227
        %s229 = sld [smem:[#allocation3 + $0x82]]
        %v230 = vstv %s229
        %v231 = vmul.f32 %v183, %v230
        %v232 = vadd.f32 %v228, %v231
        %s233 = sld [smem:[#allocation3 + $0x102]]
        %v234 = vstv %s233
        %v235 = vmul.f32 %v185, %v234
        %v236 = vadd.f32 %v232, %v235
        %s237 = sld [smem:[#allocation3 + $0x182]]
        %v238 = vstv %s237
        %v239 = vmul.f32 %v187, %v238
        %v240 = vadd.f32 %v236, %v239
        %s241 = sld [smem:[#allocation4 + $0x2]]
        %v242 = vstv %s241
        %v243 = vadd.f32 %v240, %v242
        %v244 = vmax.f32 %v243, 0.0
        %s245 = sld [smem:[#allocation3 + $0x3]]
        %v246 = vstv %s245
        %v247 = vmul.f32 %v181, %v246
        %s248 = sld [smem:[#allocation3 + $0x83]]
        %v249 = vstv %s248
        %v250 = vmul.f32 %v183, %v249
        %v251 = vadd.f32 %v247, %v250
        %s252 = sld [smem:[#allocation3 + $0x103]]
        %v253 = vstv %s252
        %v254 = vmul.f32 %v185, %v253
        %v255 = vadd.f32 %v251, %v254
        %s256 = sld [smem:[#allocation3 + $0x183]]
        %v257 = vstv %s256
        %v258 = vmul.f32 %v187, %v257
        %v259 = vadd.f32 %v255, %v258
        %s260 = sld [smem:[#allocation4 + $0x3]]
        %v261 = vstv %s260
        %v262 = vadd.f32 %v259, %v261
        %v263 = vmax.f32 %v262, 0.0
        %s264 = sld [smem:[#allocation5]]
        %v265 = vstv %s264
        %v266 = vmul.f32 %v206, %v265
        %s267 = sld [smem:[#allocation5 + $0x80]]
        %v268 = vstv %s267
        %v269 = vmul.f32 %v225, %v268
        %v270 = vadd.f32 %v266, %v269
        %s271 = sld [smem:[#allocation5 + $0x100]]
        %v272 = vstv %s271
        %v273 = vmul.f32 %v244, %v272
        %v274 = vadd.f32 %v270, %v273
        %s275 = sld [smem:[#allocation5 + $0x180]]
        %v276 = vstv %s275
        %v277 = vmul.f32 %v263, %v276
        %v278 = vadd.f32 %v274, %v277
        %s279 = sld [smem:[#allocation6]]
        %v280 = vstv %s279
        %v281 = vadd.f32 %v278, %v280
        %v282 = vmul.f32 %v181, %v281
        %v283 = vlaneseq
        %vm284 = vcmp.ge.s32.totalorder %v283, 0
        %vm285 = vcmp.lt.s32.totalorder %v283, 256
        %vm286 = vmand %vm284, %vm285
        %287 = vst.msk [vmem:[%s180] sm:$0x3] %vm286, %v282
        %s288 = sld [smem:[#allocation5 + $0x1]]
        %v289 = vstv %s288
        %v290 = vmul.f32 %v206, %v289
        %s291 = sld [smem:[#allocation5 + $0x81]]
        %v292 = vstv %s291
        %v293 = vmul.f32 %v225, %v292
        %v294 = vadd.f32 %v290, %v293
        %s295 = sld [smem:[#allocation5 + $0x101]]
        %v296 = vstv %s295
        %v297 = vmul.f32 %v244, %v296
        %v298 = vadd.f32 %v294, %v297
        %s299 = sld [smem:[#allocation5 + $0x181]]
        %v300 = vstv %s299
        %v301 = vmul.f32 %v263, %v300
        %v302 = vadd.f32 %v298, %v301
        %s303 = sld [smem:[#allocation6 + $0x1]]
        %v304 = vstv %s303
        %v305 = vadd.f32 %v302, %v304
        %v306 = vmul.f32 %v183, %v305
        %s307 = scalar_lea.vmem %s180, 2 [#allocation10]
        %308 = vst.msk [vmem:[%s307] sm:$0x3] %vm286, %v306
        %s309 = sld [smem:[#allocation5 + $0x2]]
        %v310 = vstv %s309
        %v311 = vmul.f32 %v206, %v310
        %s312 = sld [smem:[#allocation5 + $0x82]]
        %v313 = vstv %s312
        %v314 = vmul.f32 %v225, %v313
        %v315 = vadd.f32 %v311, %v314
        %s316 = sld [smem:[#allocation5 + $0x102]]
        %v317 = vstv %s316
        %v318 = vmul.f32 %v244, %v317
        %v319 = vadd.f32 %v315, %v318
        %s320 = sld [smem:[#allocation5 + $0x182]]
        %v321 = vstv %s320
        %v322 = vmul.f32 %v263, %v321
        %v323 = vadd.f32 %v319, %v322
        %s324 = sld [smem:[#allocation6 + $0x2]]
        %v325 = vstv %s324
        %v326 = vadd.f32 %v323, %v325
        %v327 = vmul.f32 %v185, %v326
        %s328 = scalar_lea.vmem %s180, 4 [#allocation10]
        %329 = vst.msk [vmem:[%s328] sm:$0x3] %vm286, %v327
        %s330 = sld [smem:[#allocation5 + $0x3]]
        %v331 = vstv %s330
        %v332 = vmul.f32 %v206, %v331
        %s333 = sld [smem:[#allocation5 + $0x83]]
        %v334 = vstv %s333
        %v335 = vmul.f32 %v225, %v334
        %v336 = vadd.f32 %v332, %v335
        %s337 = sld [smem:[#allocation5 + $0x103]]
        %v338 = vstv %s337
        %v339 = vmul.f32 %v244, %v338
        %v340 = vadd.f32 %v336, %v339
        %s341 = sld [smem:[#allocation5 + $0x183]]
        %v342 = vstv %s341
        %v343 = vmul.f32 %v263, %v342
        %v344 = vadd.f32 %v340, %v343
        %s345 = sld [smem:[#allocation6 + $0x3]]
        %v346 = vstv %s345
        %v347 = vadd.f32 %v344, %v346
        %v348 = vmul.f32 %v187, %v347
        %s349 = scalar_lea.vmem %s180, 6 [#allocation10]
        %350 = vst.msk [vmem:[%s349] sm:$0x3] %vm286, %v348
        %s351 = sand.u32 %s95, 1
        %s352 = scalar_lea.sflag [#allocation9], %s351
        %s353 = sand.u32 %s95, 1
        %s354 = smul.addr %s353, 8
        %s355 = scalar_lea.vmem [#allocation10], %s354
        // Predicated region
        $region29: #{tpu_custom_call.1} parent=23 // pred_check
          %p356 = pneg %p105
        $region30: #{tpu_custom_call.1} parent=23 // pred_check_branch
          %358 = sbr.rel (%p356) target = $region32
        $region31: #{tpu_custom_call.1} parent=23 // pred_region
          %360 = vsyncadd %s352, 0
          %s361 = smul.addr %s50, 2
          %s362 = smul.addr %s49, 8
          %s363 = sadd.s32 %s361, %s362
          %s364 = scalar_lea.hbm %s5, %s363
          %s365 = sshll.u32 %s355, 4
          %s366 = int_to_ptr.vmem [resolvable:$true] %s365
          %s367 = sshll.u32 %s364, 4
          %s368 = int_to_ptr.hbm [resolvable:$true] %s367
          %373 = dma.vmem_to_hbm [thread:$0]  %s366, 128, %s368, %s352, 32, 32, 2
        $region32: #{tpu_custom_call.1} parent=23 // pred_fallthru
          _
      $region24: #{tpu_custom_call.1} parent=5 // pred_fallthru
        _
      %p374 = scmp.le.s32.totalorder 2, %s40
      // Predicated region
      $region33: #{tpu_custom_call.1} parent=5 // pred_check
        %p375 = pneg %p374
      $region34: #{tpu_custom_call.1} parent=5 // pred_check_branch
        %377 = sbr.rel (%p375) target = $region36
      $region35: #{tpu_custom_call.1} parent=5 // pred_region
        %s378 = ssub.s32 %s40, 2
        // Predicated region
        $region37: #{tpu_custom_call.1} parent=35 // pred_check
          %p379 = pneg %p111
        $region38: #{tpu_custom_call.1} parent=35 // pred_check_branch
          %381 = sbr.rel (%p379) target = $region40
        $region39: #{tpu_custom_call.1} parent=35 // pred_region
          %s382 = sand.u32 %s96, 1
          %s383 = scalar_lea.sflag [#allocation9], %s382
          %s384 = sand.u32 %s96, 1
          %s385 = smul.addr %s384, 8
          %s386 = scalar_lea.vmem [#allocation10], %s385
          %388 = dma.done %s383, 128
        $region40: #{tpu_custom_call.1} parent=35 // pred_fallthru
          _
      $region36: #{tpu_custom_call.1} parent=5 // pred_fallthru
        _
    $region6: #{tpu_custom_call.1} parent=1 // loop_footer
      %s44 = sadd.s32 1, %s40
    $region7: #{tpu_custom_call.1} parent=1 // loop_footer_branch
      %39 = sbr.rel target = $region3
    $region8: #{tpu_custom_call.1} parent=1 // loop_exit
      _
    %389 = vsyncpa [#allocation8], 1
    %s390 = scalar_lea.sflag [#allocation8], 1
    %391 = vsyncpa %s390, 1
    %392 = vsyncpa [#allocation9], 1
    %s393 = scalar_lea.sflag [#allocation9], 1
    %394 = vsyncpa %s393, 1

</llo_original>
